<compile_context>
chip_gen: v7x
topology: tpu7x:2x2x1
jax: 0.10.0
libtpu: 0.0.40
codegen_flags: <defaults>
</compile_context>

<pallas_src>
import math
import numpy as np
import jax
import jax.numpy as jnp
from jax.experimental import pallas as pl
from jax.experimental.pallas import tpu as pltpu


def cosine_beta_schedule(timesteps, s=0.008):
    steps = timesteps + 1
    x = jnp.linspace(0.0, timesteps, steps, dtype=jnp.float32)
    alphas_cumprod = jnp.cos((x / timesteps + s) / (1 + s) * math.pi * 0.5) ** 2
    alphas_cumprod = alphas_cumprod / alphas_cumprod[0]
    betas = 1.0 - alphas_cumprod[1:] / alphas_cumprod[:-1]
    return jnp.clip(betas, 0.0, 0.999)


def _aux_pad_rows(C):
    """aux slab rows: [sqrt_ac, sqrt_1m_ac, scale, cond_0..cond_{C-1}], padded to x8."""
    return ((3 + C + 7) // 8) * 8


def make_pallas_loss_fn(B, C, HW, TB=None):
    """Fused: normalize -> q_sample -> denoiser(1x1 conv) -> MSE -> weighted batch mean.

    Layout: activations as (C, B*HW) -- channels on sublanes, batch folded into
    the lane axis.  One grid step per tile of TB batch elements (default TB=B
    -> single step); each step writes its own scalar partial of the final loss.
    """
    if TB is None:
        TB = B
    assert B % TB == 0
    NT = B // TB
    N = TB * HW                       # lanes per grid step
    AUX_PAD = _aux_pad_rows(C)
    if NT > 1:
        # sub-array lane blocks must stay 128-aligned (sublane dims are full-dim)
        assert N % 128 == 0

    def kernel(w_ref, img_ref, noise_ref, aux_ref, loss_ref):
        sa = aux_ref[0:1, :]          # sqrt(alphas_cumprod)[t_b]      (1, N)
        soma = aux_ref[1:2, :]        # sqrt(1 - alphas_cumprod)[t_b]  (1, N)
        scale = aux_ref[2:3, :]       # loss_weight[t_b] / (C*H*W*B)   (1, N)
        noise = noise_ref[...]                                     # (C, N)
        # normalize_to_neg_one_to_one + q_sample (per-lane coefficients)
        x_t = sa * (img_ref[...] * 2.0 - 1.0) + soma * noise       # (C, N)
        # synthetic denoiser: 1x1 conv as C*C scalar-broadcast FMAs on the VPU
        # (K=C=4 is far too small to amortize an MXU pass on any generation).
        acc = jnp.zeros((1, N), dtype=jnp.float32)
        for o in range(C):
            out_o = aux_ref[3 + o:4 + o, :]                        # cond bias (1, N)
            for c in range(C):
                out_o = out_o + w_ref[o * C + c] * x_t[c:c + 1, :]
            # objective == 'pred_noise' -> target = noise
            d = out_o - noise[o:o + 1, :]
            acc = acc + d * d
        # scale already folds loss_weight[t], mean over C*H*W and mean over B
        loss_ref[...] = jnp.sum(acc * scale, axis=1, keepdims=True)  # (1, 1)

    grid_spec = pltpu.PrefetchScalarGridSpec(
        num_scalar_prefetch=0,
        grid=(NT,),
        in_specs=[
            pl.BlockSpec(memory_space=pltpu.MemorySpace.SMEM),     # W flat (C*C,)
            pl.BlockSpec((C, N), lambda i: (0, i)),                # img   (C, B*HW)
            pl.BlockSpec((C, N), lambda i: (0, i)),                # noise (C, B*HW)
            pl.BlockSpec((AUX_PAD, N), lambda i: (0, i)),          # aux slab
        ],
        out_specs=pl.BlockSpec((1, 1), lambda i: (i, 0)),          # per-tile partial
    )
    return pl.pallas_call(
        kernel,
        out_shape=jax.ShapeDtypeStruct((NT, 1), jnp.float32),
        grid_spec=grid_spec,
        # each step owns a distinct output block -> shardable across v7x's 2 TCs
        compiler_params=pltpu.CompilerParams(dimension_semantics=("parallel",)),
    )


if __name__ == "__main__":
    B, C, H, Wd = 2, 4, 16, 16
    HW = H * Wd
    T = 1000                      # num_timesteps (default)
    num_classes = 10

    key = jax.random.PRNGKey(0)
    k_img, k_cls, k_t, k_noise, k_w, k_c = jax.random.split(key, 6)

    # inputs (images in [0, 1] like the PyTorch module expects)
    img = jax.random.uniform(k_img, (B, C, H, Wd), dtype=jnp.float32)
    classes = jax.random.randint(k_cls, (B,), 0, num_classes)

    # ----- __init__ buffers (beta_schedule='cosine', objective='pred_noise') -----
    betas = cosine_beta_schedule(T)
    alphas = 1.0 - betas
    alphas_cumprod = jnp.cumprod(alphas)
    sqrt_alphas_cumprod = jnp.sqrt(alphas_cumprod).astype(jnp.float32)
    sqrt_one_minus_alphas_cumprod = jnp.sqrt(1.0 - alphas_cumprod).astype(jnp.float32)
    snr = alphas_cumprod / (1.0 - alphas_cumprod)
    loss_weight = (snr / snr).astype(jnp.float32)   # pred_noise, min_snr_loss_weight=False

    # ----- deterministic synthetic denoiser parameters -----
    Wmat = (jax.random.normal(k_w, (C, C)) / jnp.sqrt(C)).astype(jnp.float32)
    bias = jnp.zeros((C,), jnp.float32)
    pos = jnp.arange(T, dtype=jnp.float32)[:, None]
    dims = jnp.arange(C, dtype=jnp.float32)[None, :]
    temb_table = (0.1 * jnp.sin(pos / (10000.0 ** (dims / C)))).astype(jnp.float32)
    cemb_table = (0.1 * jax.random.normal(k_c, (num_classes, C))).astype(jnp.float32)

    # ----- forward() glue: random t, noise, coefficient gathers (== extract()) -----
    t = jax.random.randint(k_t, (B,), 0, T).astype(jnp.int32)
    noise = jax.random.normal(k_noise, (B, C, H, Wd), dtype=jnp.float32)
    cond = (bias[None, :] + temb_table[t] + cemb_table[classes]).astype(jnp.float32)  # (B, C)

    # ----- relayout: channels on sublanes, batch folded into the lane axis -----
    img_cn = img.reshape(B, C, HW).transpose(1, 0, 2).reshape(C, B * HW)
    noise_cn = noise.reshape(B, C, HW).transpose(1, 0, 2).reshape(C, B * HW)

    def to_lanes(v):                       # (B,) -> (1, B*HW)
        return jnp.repeat(v, HW).reshape(1, B * HW)

    # fold loss_weight[t], mean over C*H*W and mean over B into one scale row
    scale_b = loss_weight[t] / float(C * HW * B)
    cond_cn = jnp.repeat(cond.T, HW, axis=1)            # (C, B*HW)
    AUX_ROWS = 3 + C
    AUX_PAD = _aux_pad_rows(C)
    pieces = [to_lanes(sqrt_alphas_cumprod[t]),
              to_lanes(sqrt_one_minus_alphas_cumprod[t]),
              to_lanes(scale_b),
              cond_cn]
    if AUX_PAD > AUX_ROWS:
        pieces.append(jnp.zeros((AUX_PAD - AUX_ROWS, B * HW), jnp.float32))
    aux = jnp.concatenate(pieces, axis=0)               # (AUX_PAD, B*HW), one DMA
    w_flat = Wmat.reshape(-1)                            # (C*C,) -> SMEM scalars

    TB = B                          # latency-bound size: one tile, one grid step
    loss_fn = make_pallas_loss_fn(B, C, HW, TB=TB)
    partials = loss_fn(w_flat, img_cn, noise_cn, aux)    # (NT, 1) per-tile partials
    loss = jnp.sum(partials)                             # == final scalar loss
    loss = jax.block_until_ready(loss)

    # ----- pure-JAX reference of the same forward for a sanity check -----
    sa = sqrt_alphas_cumprod[t][:, None, None]
    soma = sqrt_one_minus_alphas_cumprod[t][:, None, None]
    img_f = img.reshape(B, C, HW)
    noise_f = noise.reshape(B, C, HW)
    x0 = img_f * 2.0 - 1.0
    x_t = sa * x0 + soma * noise_f
    model_out = jnp.einsum('oc,bch->boh', Wmat, x_t,
                           precision=jax.lax.Precision.HIGHEST) + cond[:, :, None]
    ref_per_batch = jnp.mean((model_out - noise_f) ** 2, axis=(1, 2)) * loss_weight[t]
    ref_loss = jnp.mean(ref_per_batch)
    np.testing.assert_allclose(np.asarray(loss), np.asarray(ref_loss), rtol=2e-3, atol=2e-3)

    print("KERNEL_OK")
</pallas_src>

<mosaic_0001>
module attributes {stable_mosaic.version = 11 : i64} {
  func.func @kernel(%arg0: i32, %arg1: memref<16xf32, #tpu.memory_space<smem>>, %arg2: memref<4x512xf32, #tpu.memory_space<vmem>>, %arg3: memref<4x512xf32, #tpu.memory_space<vmem>>, %arg4: memref<8x512xf32, #tpu.memory_space<vmem>>, %arg5: memref<1x1xf32, #tpu.memory_space<vmem>>) attributes {dimension_semantics = [#tpu.dimension_semantics<parallel>], iteration_bounds = array<i64: 1>, scalar_prefetch = 0 : i64, scratch_operands = 0 : i64, tpu.core_type = #tpu.core_type<tc>, window_params = [{transform_indices = @transform_0, window_bounds = array<i64: 16>}, {transform_indices = @transform_1, window_bounds = array<i64: 4, 512>}, {transform_indices = @transform_2, window_bounds = array<i64: 4, 512>}, {transform_indices = @transform_3, window_bounds = array<i64: 8, 512>}, {transform_indices = @transform_4, window_bounds = array<i64: 1, 1>}]} {
    %c0 = arith.constant 0 : index
    %c0_0 = arith.constant 0 : index
    %0 = vector.load %arg4[%c0, %c0_0] : memref<8x512xf32, #tpu.memory_space<vmem>>, vector<1x512xf32>
    %c1 = arith.constant 1 : index
    %c0_1 = arith.constant 0 : index
    %1 = vector.load %arg4[%c1, %c0_1] : memref<8x512xf32, #tpu.memory_space<vmem>>, vector<1x512xf32>
    %c2 = arith.constant 2 : index
    %c0_2 = arith.constant 0 : index
    %2 = vector.load %arg4[%c2, %c0_2] : memref<8x512xf32, #tpu.memory_space<vmem>>, vector<1x512xf32>
    %c0_3 = arith.constant 0 : index
    %c0_4 = arith.constant 0 : index
    %3 = vector.load %arg3[%c0_3, %c0_4] : memref<4x512xf32, #tpu.memory_space<vmem>>, vector<4x512xf32>
    %c0_5 = arith.constant 0 : index
    %c0_6 = arith.constant 0 : index
    %4 = vector.load %arg2[%c0_5, %c0_6] : memref<4x512xf32, #tpu.memory_space<vmem>>, vector<4x512xf32>
    %cst = arith.constant 2.000000e+00 : f32
    %5 = vector.broadcast %cst : f32 to vector<4x512xf32>
    %6 = arith.mulf %4, %5 : vector<4x512xf32>
    %cst_7 = arith.constant 1.000000e+00 : f32
    %7 = vector.broadcast %cst_7 : f32 to vector<4x512xf32>
    %8 = arith.subf %6, %7 : vector<4x512xf32>
    %9 = vector.broadcast %0 : vector<1x512xf32> to vector<4x512xf32>
    %10 = arith.mulf %9, %8 : vector<4x512xf32>
    %11 = vector.broadcast %1 : vector<1x512xf32> to vector<4x512xf32>
    %12 = arith.mulf %11, %3 : vector<4x512xf32>
    %13 = arith.addf %10, %12 : vector<4x512xf32>
    %cst_8 = arith.constant 0.000000e+00 : f32
    %14 = vector.broadcast %cst_8 : f32 to vector<1x512xf32>
    %c3 = arith.constant 3 : index
    %c0_9 = arith.constant 0 : index
    %15 = vector.load %arg4[%c3, %c0_9] : memref<8x512xf32, #tpu.memory_space<vmem>>, vector<1x512xf32>
    %c0_10 = arith.constant 0 : index
    %16 = memref.load %arg1[%c0_10] : memref<16xf32, #tpu.memory_space<smem>>
    %17 = vector.extract_strided_slice %13 {offsets = [0, 0], sizes = [1, 512], strides = [1, 1]} : vector<4x512xf32> to vector<1x512xf32>
    %18 = vector.broadcast %16 : f32 to vector<1x512xf32>
    %19 = arith.mulf %18, %17 : vector<1x512xf32>
    %20 = arith.addf %15, %19 : vector<1x512xf32>
    %c1_11 = arith.constant 1 : index
    %21 = memref.load %arg1[%c1_11] : memref<16xf32, #tpu.memory_space<smem>>
    %22 = vector.extract_strided_slice %13 {offsets = [1, 0], sizes = [1, 512], strides = [1, 1]} : vector<4x512xf32> to vector<1x512xf32>
    %23 = vector.broadcast %21 : f32 to vector<1x512xf32>
    %24 = arith.mulf %23, %22 : vector<1x512xf32>
    %25 = arith.addf %20, %24 : vector<1x512xf32>
    %c2_12 = arith.constant 2 : index
    %26 = memref.load %arg1[%c2_12] : memref<16xf32, #tpu.memory_space<smem>>
    %27 = vector.extract_strided_slice %13 {offsets = [2, 0], sizes = [1, 512], strides = [1, 1]} : vector<4x512xf32> to vector<1x512xf32>
    %28 = vector.broadcast %26 : f32 to vector<1x512xf32>
    %29 = arith.mulf %28, %27 : vector<1x512xf32>
    %30 = arith.addf %25, %29 : vector<1x512xf32>
    %c3_13 = arith.constant 3 : index
    %31 = memref.load %arg1[%c3_13] : memref<16xf32, #tpu.memory_space<smem>>
    %32 = vector.extract_strided_slice %13 {offsets = [3, 0], sizes = [1, 512], strides = [1, 1]} : vector<4x512xf32> to vector<1x512xf32>
    %33 = vector.broadcast %31 : f32 to vector<1x512xf32>
    %34 = arith.mulf %33, %32 : vector<1x512xf32>
    %35 = arith.addf %30, %34 : vector<1x512xf32>
    %36 = vector.extract_strided_slice %3 {offsets = [0, 0], sizes = [1, 512], strides = [1, 1]} : vector<4x512xf32> to vector<1x512xf32>
    %37 = arith.subf %35, %36 : vector<1x512xf32>
    %38 = arith.mulf %37, %37 : vector<1x512xf32>
    %39 = arith.addf %14, %38 : vector<1x512xf32>
    %c4 = arith.constant 4 : index
    %c0_14 = arith.constant 0 : index
    %40 = vector.load %arg4[%c4, %c0_14] : memref<8x512xf32, #tpu.memory_space<vmem>>, vector<1x512xf32>
    %c4_15 = arith.constant 4 : index
    %41 = memref.load %arg1[%c4_15] : memref<16xf32, #tpu.memory_space<smem>>
    %42 = vector.extract_strided_slice %13 {offsets = [0, 0], sizes = [1, 512], strides = [1, 1]} : vector<4x512xf32> to vector<1x512xf32>
    %43 = vector.broadcast %41 : f32 to vector<1x512xf32>
    %44 = arith.mulf %43, %42 : vector<1x512xf32>
    %45 = arith.addf %40, %44 : vector<1x512xf32>
    %c5 = arith.constant 5 : index
    %46 = memref.load %arg1[%c5] : memref<16xf32, #tpu.memory_space<smem>>
    %47 = vector.extract_strided_slice %13 {offsets = [1, 0], sizes = [1, 512], strides = [1, 1]} : vector<4x512xf32> to vector<1x512xf32>
    %48 = vector.broadcast %46 : f32 to vector<1x512xf32>
    %49 = arith.mulf %48, %47 : vector<1x512xf32>
    %50 = arith.addf %45, %49 : vector<1x512xf32>
    %c6 = arith.constant 6 : index
    %51 = memref.load %arg1[%c6] : memref<16xf32, #tpu.memory_space<smem>>
    %52 = vector.extract_strided_slice %13 {offsets = [2, 0], sizes = [1, 512], strides = [1, 1]} : vector<4x512xf32> to vector<1x512xf32>
    %53 = vector.broadcast %51 : f32 to vector<1x512xf32>
    %54 = arith.mulf %53, %52 : vector<1x512xf32>
    %55 = arith.addf %50, %54 : vector<1x512xf32>
    %c7 = arith.constant 7 : index
    %56 = memref.load %arg1[%c7] : memref<16xf32, #tpu.memory_space<smem>>
    %57 = vector.extract_strided_slice %13 {offsets = [3, 0], sizes = [1, 512], strides = [1, 1]} : vector<4x512xf32> to vector<1x512xf32>
    %58 = vector.broadcast %56 : f32 to vector<1x512xf32>
    %59 = arith.mulf %58, %57 : vector<1x512xf32>
    %60 = arith.addf %55, %59 : vector<1x512xf32>
    %61 = vector.extract_strided_slice %3 {offsets = [1, 0], sizes = [1, 512], strides = [1, 1]} : vector<4x512xf32> to vector<1x512xf32>
    %62 = arith.subf %60, %61 : vector<1x512xf32>
    %63 = arith.mulf %62, %62 : vector<1x512xf32>
    %64 = arith.addf %39, %63 : vector<1x512xf32>
    %c5_16 = arith.constant 5 : index
    %c0_17 = arith.constant 0 : index
    %65 = vector.load %arg4[%c5_16, %c0_17] : memref<8x512xf32, #tpu.memory_space<vmem>>, vector<1x512xf32>
    %c8 = arith.constant 8 : index
    %66 = memref.load %arg1[%c8] : memref<16xf32, #tpu.memory_space<smem>>
    %67 = vector.extract_strided_slice %13 {offsets = [0, 0], sizes = [1, 512], strides = [1, 1]} : vector<4x512xf32> to vector<1x512xf32>
    %68 = vector.broadcast %66 : f32 to vector<1x512xf32>
    %69 = arith.mulf %68, %67 : vector<1x512xf32>
    %70 = arith.addf %65, %69 : vector<1x512xf32>
    %c9 = arith.constant 9 : index
    %71 = memref.load %arg1[%c9] : memref<16xf32, #tpu.memory_space<smem>>
    %72 = vector.extract_strided_slice %13 {offsets = [1, 0], sizes = [1, 512], strides = [1, 1]} : vector<4x512xf32> to vector<1x512xf32>
    %73 = vector.broadcast %71 : f32 to vector<1x512xf32>
    %74 = arith.mulf %73, %72 : vector<1x512xf32>
    %75 = arith.addf %70, %74 : vector<1x512xf32>
    %c10 = arith.constant 10 : index
    %76 = memref.load %arg1[%c10] : memref<16xf32, #tpu.memory_space<smem>>
    %77 = vector.extract_strided_slice %13 {offsets = [2, 0], sizes = [1, 512], strides = [1, 1]} : vector<4x512xf32> to vector<1x512xf32>
    %78 = vector.broadcast %76 : f32 to vector<1x512xf32>
    %79 = arith.mulf %78, %77 : vector<1x512xf32>
    %80 = arith.addf %75, %79 : vector<1x512xf32>
    %c11 = arith.constant 11 : index
    %81 = memref.load %arg1[%c11] : memref<16xf32, #tpu.memory_space<smem>>
    %82 = vector.extract_strided_slice %13 {offsets = [3, 0], sizes = [1, 512], strides = [1, 1]} : vector<4x512xf32> to vector<1x512xf32>
    %83 = vector.broadcast %81 : f32 to vector<1x512xf32>
    %84 = arith.mulf %83, %82 : vector<1x512xf32>
    %85 = arith.addf %80, %84 : vector<1x512xf32>
    %86 = vector.extract_strided_slice %3 {offsets = [2, 0], sizes = [1, 512], strides = [1, 1]} : vector<4x512xf32> to vector<1x512xf32>
    %87 = arith.subf %85, %86 : vector<1x512xf32>
    %88 = arith.mulf %87, %87 : vector<1x512xf32>
    %89 = arith.addf %64, %88 : vector<1x512xf32>
    %c6_18 = arith.constant 6 : index
    %c0_19 = arith.constant 0 : index
    %90 = vector.load %arg4[%c6_18, %c0_19] : memref<8x512xf32, #tpu.memory_space<vmem>>, vector<1x512xf32>
    %c12 = arith.constant 12 : index
    %91 = memref.load %arg1[%c12] : memref<16xf32, #tpu.memory_space<smem>>
    %92 = vector.extract_strided_slice %13 {offsets = [0, 0], sizes = [1, 512], strides = [1, 1]} : vector<4x512xf32> to vector<1x512xf32>
    %93 = vector.broadcast %91 : f32 to vector<1x512xf32>
    %94 = arith.mulf %93, %92 : vector<1x512xf32>
    %95 = arith.addf %90, %94 : vector<1x512xf32>
    %c13 = arith.constant 13 : index
    %96 = memref.load %arg1[%c13] : memref<16xf32, #tpu.memory_space<smem>>
    %97 = vector.extract_strided_slice %13 {offsets = [1, 0], sizes = [1, 512], strides = [1, 1]} : vector<4x512xf32> to vector<1x512xf32>
    %98 = vector.broadcast %96 : f32 to vector<1x512xf32>
    %99 = arith.mulf %98, %97 : vector<1x512xf32>
    %100 = arith.addf %95, %99 : vector<1x512xf32>
    %c14 = arith.constant 14 : index
    %101 = memref.load %arg1[%c14] : memref<16xf32, #tpu.memory_space<smem>>
    %102 = vector.extract_strided_slice %13 {offsets = [2, 0], sizes = [1, 512], strides = [1, 1]} : vector<4x512xf32> to vector<1x512xf32>
    %103 = vector.broadcast %101 : f32 to vector<1x512xf32>
    %104 = arith.mulf %103, %102 : vector<1x512xf32>
    %105 = arith.addf %100, %104 : vector<1x512xf32>
    %c15 = arith.constant 15 : index
    %106 = memref.load %arg1[%c15] : memref<16xf32, #tpu.memory_space<smem>>
    %107 = vector.extract_strided_slice %13 {offsets = [3, 0], sizes = [1, 512], strides = [1, 1]} : vector<4x512xf32> to vector<1x512xf32>
    %108 = vector.broadcast %106 : f32 to vector<1x512xf32>
    %109 = arith.mulf %108, %107 : vector<1x512xf32>
    %110 = arith.addf %105, %109 : vector<1x512xf32>
    %111 = vector.extract_strided_slice %3 {offsets = [3, 0], sizes = [1, 512], strides = [1, 1]} : vector<4x512xf32> to vector<1x512xf32>
    %112 = arith.subf %110, %111 : vector<1x512xf32>
    %113 = arith.mulf %112, %112 : vector<1x512xf32>
    %114 = arith.addf %89, %113 : vector<1x512xf32>
    %115 = arith.mulf %114, %2 : vector<1x512xf32>
    %cst_20 = arith.constant dense<0.000000e+00> : vector<1xf32>
    %116 = vector.multi_reduction <add>, %115, %cst_20 [1] : vector<1x512xf32> to vector<1xf32>
    %117 = vector.shape_cast %116 : vector<1xf32> to vector<1x1xf32>
    %c0_21 = arith.constant 0 : index
    %c0_22 = arith.constant 0 : index
    %118 = vector.load %arg5[%c0_21, %c0_22] : memref<1x1xf32, #tpu.memory_space<vmem>>, vector<1x1xf32>
    tpu.vector_store %arg5[%c0_21, %c0_22], %117 {strides = array<i32>} : memref<1x1xf32, #tpu.memory_space<vmem>>, vector<1x1xf32>,
    return
  }
  func.func @transform_0(%arg0: i32) -> i32 {
    %c0_i32 = arith.constant 0 : i32
    %c0_i32_0 = arith.constant 0 : i32
    return %c0_i32 : i32
  }
  func.func @transform_1(%arg0: i32) -> (i32, i32) {
    %c0_i32 = arith.constant 0 : i32
    %c0_i32_0 = arith.constant 0 : i32
    return %c0_i32, %arg0 : i32, i32
  }
  func.func @transform_2(%arg0: i32) -> (i32, i32) {
    %c0_i32 = arith.constant 0 : i32
    %c0_i32_0 = arith.constant 0 : i32
    return %c0_i32, %arg0 : i32, i32
  }
  func.func @transform_3(%arg0: i32) -> (i32, i32) {
    %c0_i32 = arith.constant 0 : i32
    %c0_i32_0 = arith.constant 0 : i32
    return %c0_i32, %arg0 : i32, i32
  }
  func.func @transform_4(%arg0: i32) -> (i32, i32) {
    %c0_i32 = arith.constant 0 : i32
    %c0_i32_0 = arith.constant 0 : i32
    return %arg0, %c0_i32 : i32, i32
  }
}

</mosaic_0001>

<llo_original>
// kernel: tpu_custom_call.1
$region0: #{tpu_custom_call.1}
  #allocation0 [shape = 'u32[]', space=smem, size = 0x4, offset = 0x4, fixed_abs, tag = 'smem constant byte address 0x4 - core index']
  #allocation1 [shape = 'u32[144,128]{1,0:T(1,128)}', space=vmem, size = 0x12000, scoped, tag = 'internal scratch']
  %s0 = inlined_call_operand.hbm [shape: f32[16], index: 0, kind: input, shape index: {}]
  %s1 = inlined_call_operand.hbm [shape: f32[4,512], index: 1, kind: input, shape index: {}]
  %s2 = inlined_call_operand.hbm [shape: f32[4,512], index: 2, kind: input, shape index: {}]
  %s3 = inlined_call_operand.hbm [shape: f32[8,512], index: 3, kind: input, shape index: {}]
  %s4 = inlined_call_operand.hbm [shape: f32[1,1], index: 4, kind: output, shape index: {}]
  %s5 = sld [smem:[#allocation0]]
  $region42: #{tpu_custom_call.1} parent=0
    _
  %s7 = ssub.s32 1, %s5
  %s8 = scalar_select 0, %s7, %s5
  $region1: #{tpu_custom_call.1} parent=0
    #allocation2 [shape = 'u8[512]{0}', space=smem, size = 0x200, scoped, tag = 'input window, operand 0, single buffered']
    #allocation3 [shape = 's32[1]{0}', space=sflag, size = 0x4, scoped, tag = 'scoped memory for tpu_custom_call.1']
    #allocation4 [shape = 's32[1]{0}', space=sflag, size = 0x4, scoped, tag = 'scoped memory for tpu_custom_call.1']
    #allocation5 [shape = 's32[1]{0}', space=sflag, size = 0x4, scoped, tag = 'scoped memory for tpu_custom_call.1']
    #allocation6 [shape = 'u8[8192]{0}', space=vmem, size = 0x2000, scoped, tag = 'input window, operand 1, single buffered']
    #allocation7 [shape = 'u8[8192]{0}', space=vmem, size = 0x2000, scoped, tag = 'input window, operand 2, single buffered']
    #allocation8 [shape = 's32[1]{0}', space=sflag, size = 0x4, scoped, tag = 'scoped memory for tpu_custom_call.1']
    #allocation9 [shape = 'u8[16384]{0}', space=vmem, size = 0x4000, scoped, tag = 'input window, operand 3, single buffered']
    #allocation10 [shape = 'u8[512]{0}', space=vmem, size = 0x400, scoped, tag = 'output window, operand 0, single buffered']
    %9 = vsyncpa [#allocation5], 0
    %10 = vsyncpa [#allocation3], 0
    %11 = vsyncpa [#allocation8], 0
    %12 = vsyncpa [#allocation4], 0
    // Predicated region
    $region2: #{tpu_custom_call.1} parent=1 // pred_check
      _
    $region3: #{tpu_custom_call.1} parent=1 // pred_check_branch
      %14 = sbr.rel (0) target = $region5
    $region4: #{tpu_custom_call.1} parent=1 // pred_region
      %s16 = ssub.s32 16, 16
      %17 = vsyncadd [#allocation5], %s16
      %20 = dma.hbm_to_smem %s0, 16, [#allocation2], [#allocation5]
    $region5: #{tpu_custom_call.1} parent=1 // pred_fallthru
      _
    // Predicated region
    $region6: #{tpu_custom_call.1} parent=1 // pred_check
      _
    $region7: #{tpu_custom_call.1} parent=1 // pred_check_branch
      %22 = sbr.rel (0) target = $region9
    $region8: #{tpu_custom_call.1} parent=1 // pred_region
      %s24 = ssub.s32 256, 256
      %25 = vsyncadd [#allocation3], %s24
      %s27 = sshll.u32 [#allocation6], 4
      %s28 = int_to_ptr.vmem [resolvable:$true] %s27
      %30 = dma.hbm_to_vmem [thread:$0]  %s1, 256, %s28, [#allocation3]
    $region9: #{tpu_custom_call.1} parent=1 // pred_fallthru
      _
    // Predicated region
    $region10: #{tpu_custom_call.1} parent=1 // pred_check
      _
    $region11: #{tpu_custom_call.1} parent=1 // pred_check_branch
      %32 = sbr.rel (0) target = $region13
    $region12: #{tpu_custom_call.1} parent=1 // pred_region
      %s34 = ssub.s32 256, 256
      %35 = vsyncadd [#allocation8], %s34
      %s37 = sshll.u32 [#allocation7], 4
      %s38 = int_to_ptr.vmem [resolvable:$true] %s37
      %40 = dma.hbm_to_vmem [thread:$0]  %s2, 256, %s38, [#allocation8]
    $region13: #{tpu_custom_call.1} parent=1 // pred_fallthru
      _
    // Predicated region
    $region14: #{tpu_custom_call.1} parent=1 // pred_check
      _
    $region15: #{tpu_custom_call.1} parent=1 // pred_check_branch
      %42 = sbr.rel (0) target = $region17
    $region16: #{tpu_custom_call.1} parent=1 // pred_region
      %s44 = ssub.s32 512, 512
      %45 = vsyncadd [#allocation8], %s44
      %s47 = sshll.u32 [#allocation9], 4
      %s48 = int_to_ptr.vmem [resolvable:$true] %s47
      %50 = dma.hbm_to_vmem [thread:$0]  %s3, 512, %s48, [#allocation8]
    $region17: #{tpu_custom_call.1} parent=1 // pred_fallthru
      _
    // Predicated region
    $region18: #{tpu_custom_call.1} parent=1 // pred_check
      _
    $region19: #{tpu_custom_call.1} parent=1 // pred_check_branch
      %52 = sbr.rel (0) target = $region21
    $region20: #{tpu_custom_call.1} parent=1 // pred_region
      %53 = dma.done [#allocation5], 16
    $region21: #{tpu_custom_call.1} parent=1 // pred_fallthru
      _
    // Predicated region
    $region22: #{tpu_custom_call.1} parent=1 // pred_check
      _
    $region23: #{tpu_custom_call.1} parent=1 // pred_check_branch
      %55 = sbr.rel (0) target = $region25
    $region24: #{tpu_custom_call.1} parent=1 // pred_region
      %56 = dma.done [#allocation3], 256
    $region25: #{tpu_custom_call.1} parent=1 // pred_fallthru
      _
    // Predicated region
    $region26: #{tpu_custom_call.1} parent=1 // pred_check
      _
    $region27: #{tpu_custom_call.1} parent=1 // pred_check_branch
      %58 = sbr.rel (0) target = $region29
    $region28: #{tpu_custom_call.1} parent=1 // pred_region
      %59 = dma.done [#allocation8], 256
    $region29: #{tpu_custom_call.1} parent=1 // pred_fallthru
      _
    // Predicated region
    $region30: #{tpu_custom_call.1} parent=1 // pred_check
      _
    $region31: #{tpu_custom_call.1} parent=1 // pred_check_branch
      %61 = sbr.rel (0) target = $region33
    $region32: #{tpu_custom_call.1} parent=1 // pred_region
      %62 = dma.done [#allocation8], 512
    $region33: #{tpu_custom_call.1} parent=1 // pred_fallthru
      _
    %63 = sfence
    %v64 = vld [vmem:[#allocation9] ss:$8 sm:$0xf]
    %s65 = scalar_lea.vmem [#allocation9], 1
    %v66 = vld [vmem:[%s65] ss:$8 sm:$0xf]
    %s67 = scalar_lea.vmem [#allocation9], 2
    %v68 = vld [vmem:[%s67] ss:$8 sm:$0xf]
    %v69 = vld [vmem:[#allocation7] sm:$0xff]
    %v70 = vld [vmem:[#allocation7 + $0x8] sm:$0xff]
    %v71 = vld [vmem:[#allocation6] sm:$0xff]
    %v72 = vld [vmem:[#allocation6 + $0x8] sm:$0xff]
    %v73 = vmul.f32 %v71, 2.0
    %v74 = vmul.f32 %v72, 2.0
    %v75 = vsub.f32 %v73, 1.0
    %v76 = vsub.f32 %v74, 1.0
    %v78 = vlaneseq
    %v79 = vshrl.u32 %v78, 7
    %v80 = vsub.s32 0, %v79
    %v81 = vrot.slane %v64, %v80
    %v82 = vlaneseq
    %v83 = vshrl.u32 %v82, 7
    %v84 = vsub.s32 1, %v83
    %v85 = vrot.slane %v64, %v84
    %v86 = vlaneseq
    %v87 = vshrl.u32 %v86, 7
    %v88 = vsub.s32 2, %v87
    %v89 = vrot.slane %v64, %v88
    %v90 = vlaneseq
    %v91 = vshrl.u32 %v90, 7
    %v92 = vsub.s32 3, %v91
    %v93 = vrot.slane %v64, %v92
    %v100 = vcombine.high %v75, %v75
    %v101 = vcombine.high %v76, %v76
    %v104 = vmul.f32 %v81, %v75
    %v105 = vmul.f32 %v85, %v100
    %v106 = vmul.f32 %v89, %v76
    %v107 = vmul.f32 %v93, %v101
    %v109 = vlaneseq
    %v110 = vshrl.u32 %v109, 7
    %v111 = vsub.s32 0, %v110
    %v112 = vrot.slane %v66, %v111
    %v113 = vlaneseq
    %v114 = vshrl.u32 %v113, 7
    %v115 = vsub.s32 1, %v114
    %v116 = vrot.slane %v66, %v115
    %v117 = vlaneseq
    %v118 = vshrl.u32 %v117, 7
    %v119 = vsub.s32 2, %v118
    %v120 = vrot.slane %v66, %v119
    %v121 = vlaneseq
    %v122 = vshrl.u32 %v121, 7
    %v123 = vsub.s32 3, %v122
    %v124 = vrot.slane %v66, %v123
    %v131 = vcombine.high %v69, %v69
    %v132 = vcombine.high %v70, %v70
    %v135 = vmul.f32 %v112, %v69
    %v136 = vmul.f32 %v116, %v131
    %v137 = vmul.f32 %v120, %v70
    %v138 = vmul.f32 %v124, %v132
    %v139 = vadd.f32 %v104, %v135
    %v140 = vadd.f32 %v105, %v136
    %v141 = vadd.f32 %v106, %v137
    %v142 = vadd.f32 %v107, %v138
    %s143 = scalar_lea.vmem [#allocation9], 3
    %v144 = vld [vmem:[%s143] ss:$8 sm:$0xf]
    %s145 = sld [smem:[#allocation2]]
    %v146 = vstv %s145
    %v147 = vmul.f32 %v146, %v139
    %v148 = vmul.f32 %v146, %v140
    %v149 = vmul.f32 %v146, %v141
    %v150 = vmul.f32 %v146, %v142
    %v155 = vcombine.low %v147, %v148
    %v156 = vcombine.low %v149, %v150
    %v158 = vunpack.c.l.s4 1966171168
    %v159 = vunpack.c.0.s8 %v158
    %v160 = vlaneseq
    %v161 = vshrl.u32 %v160, 7
    %v162 = vsub.s32 %v159, %v161
    %v163 = vrot.slane %v155, %v162
    %v165 = vunpack.c.l.s4 1966171168
    %v166 = vunpack.c.0.s8 %v165
    %v167 = vlaneseq
    %v168 = vshrl.u32 %v167, 7
    %v169 = vsub.s32 %v166, %v168
    %v170 = vrot.slane %v156, %v169
    %v171 = vcombine.low %v163, %v170
    %v173 = vunpack.c.l.s4 1966171168
    %v174 = vunpack.c.0.s8 %v173
    %v175 = vlaneseq
    %v176 = vshrl.u32 %v175, 7
    %v177 = vsub.s32 %v174, %v176
    %v178 = vrot.slane %v171, %v177
    %v180 = vadd.f32 %v144, %v178
    %s181 = sld [smem:[#allocation2 + $0x1]]
    %v182 = vstv %s181
    %v183 = vmul.f32 %v182, %v139
    %v184 = vmul.f32 %v182, %v140
    %v185 = vmul.f32 %v182, %v141
    %v186 = vmul.f32 %v182, %v142
    %v191 = vcombine.low %v183, %v184
    %v192 = vcombine.low %v185, %v186
    %v194 = vunpack.c.l.s4 1966171168
    %v195 = vunpack.c.0.s8 %v194
    %v196 = vlaneseq
    %v197 = vshrl.u32 %v196, 7
    %v198 = vsub.s32 %v195, %v197
    %v199 = vrot.slane %v191, %v198
    %v201 = vunpack.c.l.s4 1966171168
    %v202 = vunpack.c.0.s8 %v201
    %v203 = vlaneseq
    %v204 = vshrl.u32 %v203, 7
    %v205 = vsub.s32 %v202, %v204
    %v206 = vrot.slane %v192, %v205
    %v207 = vcombine.high %v199, %v206
    %v209 = vunpack.c.l.s4 1966171168
    %v210 = vunpack.c.0.s8 %v209
    %v211 = vlaneseq
    %v212 = vshrl.u32 %v211, 7
    %v213 = vsub.s32 %v210, %v212
    %v214 = vrot.slane %v207, %v213
    %v216 = vadd.f32 %v180, %v214
    %s217 = sld [smem:[#allocation2 + $0x2]]
    %v218 = vstv %s217
    %v219 = vmul.f32 %v218, %v139
    %v220 = vmul.f32 %v218, %v140
    %v221 = vmul.f32 %v218, %v141
    %v222 = vmul.f32 %v218, %v142
    %v227 = vcombine.low %v219, %v220
    %v228 = vcombine.low %v221, %v222
    %v230 = vunpack.c.l.s4 1966171168
    %v231 = vunpack.c.0.s8 %v230
    %v232 = vlaneseq
    %v233 = vshrl.u32 %v232, 7
    %v234 = vsub.s32 %v231, %v233
    %v235 = vrot.slane %v227, %v234
    %v237 = vunpack.c.l.s4 1966171168
    %v238 = vunpack.c.0.s8 %v237
    %v239 = vlaneseq
    %v240 = vshrl.u32 %v239, 7
    %v241 = vsub.s32 %v238, %v240
    %v242 = vrot.slane %v228, %v241
    %v243 = vcombine.low %v235, %v242
    %v245 = vunpack.c.l.s4 1966171168
    %v246 = vunpack.c.0.s8 %v245
    %v247 = vlaneseq
    %v248 = vshrl.u32 %v247, 7
    %v249 = vsub.s32 %v246, %v248
    %v250 = vrot.slane %v243, %v249
    %v251 = vcombine.high %v250, %v250
    %v253 = vadd.f32 %v216, %v251
    %s254 = sld [smem:[#allocation2 + $0x3]]
    %v255 = vstv %s254
    %v256 = vmul.f32 %v255, %v139
    %v257 = vmul.f32 %v255, %v140
    %v258 = vmul.f32 %v255, %v141
    %v259 = vmul.f32 %v255, %v142
    %v264 = vcombine.low %v256, %v257
    %v265 = vcombine.low %v258, %v259
    %v267 = vunpack.c.l.s4 1966171168
    %v268 = vunpack.c.0.s8 %v267
    %v269 = vlaneseq
    %v270 = vshrl.u32 %v269, 7
    %v271 = vsub.s32 %v268, %v270
    %v272 = vrot.slane %v264, %v271
    %v274 = vunpack.c.l.s4 1966171168
    %v275 = vunpack.c.0.s8 %v274
    %v276 = vlaneseq
    %v277 = vshrl.u32 %v276, 7
    %v278 = vsub.s32 %v275, %v277
    %v279 = vrot.slane %v265, %v278
    %v280 = vcombine.high %v272, %v279
    %v282 = vunpack.c.l.s4 1966171168
    %v283 = vunpack.c.0.s8 %v282
    %v284 = vlaneseq
    %v285 = vshrl.u32 %v284, 7
    %v286 = vsub.s32 %v283, %v285
    %v287 = vrot.slane %v280, %v286
    %v288 = vcombine.high %v287, %v287
    %v290 = vadd.f32 %v253, %v288
    %v292 = vunpack.c.l.s4 1966171168
    %v293 = vunpack.c.0.s8 %v292
    %v294 = vlaneseq
    %v295 = vshrl.u32 %v294, 7
    %v296 = vsub.s32 %v293, %v295
    %v297 = vrot.slane %v69, %v296
    %v299 = vunpack.c.l.s4 1966171168
    %v300 = vunpack.c.0.s8 %v299
    %v301 = vlaneseq
    %v302 = vshrl.u32 %v301, 7
    %v303 = vsub.s32 %v300, %v302
    %v304 = vrot.slane %v70, %v303
    %v305 = vcombine.low %v297, %v304
    %v307 = vunpack.c.l.s4 1966171168
    %v308 = vunpack.c.0.s8 %v307
    %v309 = vlaneseq
    %v310 = vshrl.u32 %v309, 7
    %v311 = vsub.s32 %v308, %v310
    %v312 = vrot.slane %v305, %v311
    %v314 = vsub.f32 %v290, %v312
    %v315 = vmul.f32 %v314, %v314
    %v316 = vadd.f32 %v315, 0.0
    %s317 = scalar_lea.vmem [#allocation9], 4
    %v318 = vld [vmem:[%s317] ss:$8 sm:$0xf]
    %s319 = sld [smem:[#allocation2 + $0x4]]
    %v320 = vstv %s319
    %v321 = vmul.f32 %v320, %v139
    %v322 = vmul.f32 %v320, %v140
    %v323 = vmul.f32 %v320, %v141
    %v324 = vmul.f32 %v320, %v142
    %v329 = vcombine.low %v321, %v322
    %v330 = vcombine.low %v323, %v324
    %v332 = vunpack.c.l.s4 1966171168
    %v333 = vunpack.c.0.s8 %v332
    %v334 = vlaneseq
    %v335 = vshrl.u32 %v334, 7
    %v336 = vsub.s32 %v333, %v335
    %v337 = vrot.slane %v329, %v336
    %v339 = vunpack.c.l.s4 1966171168
    %v340 = vunpack.c.0.s8 %v339
    %v341 = vlaneseq
    %v342 = vshrl.u32 %v341, 7
    %v343 = vsub.s32 %v340, %v342
    %v344 = vrot.slane %v330, %v343
    %v345 = vcombine.low %v337, %v344
    %v347 = vunpack.c.l.s4 1966171168
    %v348 = vunpack.c.0.s8 %v347
    %v349 = vlaneseq
    %v350 = vshrl.u32 %v349, 7
    %v351 = vsub.s32 %v348, %v350
    %v352 = vrot.slane %v345, %v351
    %v354 = vadd.f32 %v318, %v352
    %s355 = sld [smem:[#allocation2 + $0x5]]
    %v356 = vstv %s355
    %v357 = vmul.f32 %v356, %v139
    %v358 = vmul.f32 %v356, %v140
    %v359 = vmul.f32 %v356, %v141
    %v360 = vmul.f32 %v356, %v142
    %v365 = vcombine.low %v357, %v358
    %v366 = vcombine.low %v359, %v360
    %v368 = vunpack.c.l.s4 1966171168
    %v369 = vunpack.c.0.s8 %v368
    %v370 = vlaneseq
    %v371 = vshrl.u32 %v370, 7
    %v372 = vsub.s32 %v369, %v371
    %v373 = vrot.slane %v365, %v372
    %v375 = vunpack.c.l.s4 1966171168
    %v376 = vunpack.c.0.s8 %v375
    %v377 = vlaneseq
    %v378 = vshrl.u32 %v377, 7
    %v379 = vsub.s32 %v376, %v378
    %v380 = vrot.slane %v366, %v379
    %v381 = vcombine.high %v373, %v380
    %v383 = vunpack.c.l.s4 1966171168
    %v384 = vunpack.c.0.s8 %v383
    %v385 = vlaneseq
    %v386 = vshrl.u32 %v385, 7
    %v387 = vsub.s32 %v384, %v386
    %v388 = vrot.slane %v381, %v387
    %v390 = vadd.f32 %v354, %v388
    %s391 = sld [smem:[#allocation2 + $0x6]]
    %v392 = vstv %s391
    %v393 = vmul.f32 %v392, %v139
    %v394 = vmul.f32 %v392, %v140
    %v395 = vmul.f32 %v392, %v141
    %v396 = vmul.f32 %v392, %v142
    %v401 = vcombine.low %v393, %v394
    %v402 = vcombine.low %v395, %v396
    %v404 = vunpack.c.l.s4 1966171168
    %v405 = vunpack.c.0.s8 %v404
    %v406 = vlaneseq
    %v407 = vshrl.u32 %v406, 7
    %v408 = vsub.s32 %v405, %v407
    %v409 = vrot.slane %v401, %v408
    %v411 = vunpack.c.l.s4 1966171168
    %v412 = vunpack.c.0.s8 %v411
    %v413 = vlaneseq
    %v414 = vshrl.u32 %v413, 7
    %v415 = vsub.s32 %v412, %v414
    %v416 = vrot.slane %v402, %v415
    %v417 = vcombine.low %v409, %v416
    %v419 = vunpack.c.l.s4 1966171168
    %v420 = vunpack.c.0.s8 %v419
    %v421 = vlaneseq
    %v422 = vshrl.u32 %v421, 7
    %v423 = vsub.s32 %v420, %v422
    %v424 = vrot.slane %v417, %v423
    %v425 = vcombine.high %v424, %v424
    %v427 = vadd.f32 %v390, %v425
    %s428 = sld [smem:[#allocation2 + $0x7]]
    %v429 = vstv %s428
    %v430 = vmul.f32 %v429, %v139
    %v431 = vmul.f32 %v429, %v140
    %v432 = vmul.f32 %v429, %v141
    %v433 = vmul.f32 %v429, %v142
    %v438 = vcombine.low %v430, %v431
    %v439 = vcombine.low %v432, %v433
    %v441 = vunpack.c.l.s4 1966171168
    %v442 = vunpack.c.0.s8 %v441
    %v443 = vlaneseq
    %v444 = vshrl.u32 %v443, 7
    %v445 = vsub.s32 %v442, %v444
    %v446 = vrot.slane %v438, %v445
    %v448 = vunpack.c.l.s4 1966171168
    %v449 = vunpack.c.0.s8 %v448
    %v450 = vlaneseq
    %v451 = vshrl.u32 %v450, 7
    %v452 = vsub.s32 %v449, %v451
    %v453 = vrot.slane %v439, %v452
    %v454 = vcombine.high %v446, %v453
    %v456 = vunpack.c.l.s4 1966171168
    %v457 = vunpack.c.0.s8 %v456
    %v458 = vlaneseq
    %v459 = vshrl.u32 %v458, 7
    %v460 = vsub.s32 %v457, %v459
    %v461 = vrot.slane %v454, %v460
    %v462 = vcombine.high %v461, %v461
    %v464 = vadd.f32 %v427, %v462
    %v465 = vcombine.high %v297, %v304
    %v467 = vunpack.c.l.s4 1966171168
    %v468 = vunpack.c.0.s8 %v467
    %v469 = vlaneseq
    %v470 = vshrl.u32 %v469, 7
    %v471 = vsub.s32 %v468, %v470
    %v472 = vrot.slane %v465, %v471
    %v474 = vsub.f32 %v464, %v472
    %v475 = vmul.f32 %v474, %v474
    %v476 = vadd.f32 %v316, %v475
    %s477 = scalar_lea.vmem [#allocation9], 5
    %v478 = vld [vmem:[%s477] ss:$8 sm:$0xf]
    %s479 = sld [smem:[#allocation2 + $0x8]]
    %v480 = vstv %s479
    %v481 = vmul.f32 %v480, %v139
    %v482 = vmul.f32 %v480, %v140
    %v483 = vmul.f32 %v480, %v141
    %v484 = vmul.f32 %v480, %v142
    %v489 = vcombine.low %v481, %v482
    %v490 = vcombine.low %v483, %v484
    %v492 = vunpack.c.l.s4 1966171168
    %v493 = vunpack.c.0.s8 %v492
    %v494 = vlaneseq
    %v495 = vshrl.u32 %v494, 7
    %v496 = vsub.s32 %v493, %v495
    %v497 = vrot.slane %v489, %v496
    %v499 = vunpack.c.l.s4 1966171168
    %v500 = vunpack.c.0.s8 %v499
    %v501 = vlaneseq
    %v502 = vshrl.u32 %v501, 7
    %v503 = vsub.s32 %v500, %v502
    %v504 = vrot.slane %v490, %v503
    %v505 = vcombine.low %v497, %v504
    %v507 = vunpack.c.l.s4 1966171168
    %v508 = vunpack.c.0.s8 %v507
    %v509 = vlaneseq
    %v510 = vshrl.u32 %v509, 7
    %v511 = vsub.s32 %v508, %v510
    %v512 = vrot.slane %v505, %v511
    %v514 = vadd.f32 %v478, %v512
    %s515 = sld [smem:[#allocation2 + $0x9]]
    %v516 = vstv %s515
    %v517 = vmul.f32 %v516, %v139
    %v518 = vmul.f32 %v516, %v140
    %v519 = vmul.f32 %v516, %v141
    %v520 = vmul.f32 %v516, %v142
    %v525 = vcombine.low %v517, %v518
    %v526 = vcombine.low %v519, %v520
    %v528 = vunpack.c.l.s4 1966171168
    %v529 = vunpack.c.0.s8 %v528
    %v530 = vlaneseq
    %v531 = vshrl.u32 %v530, 7
    %v532 = vsub.s32 %v529, %v531
    %v533 = vrot.slane %v525, %v532
    %v535 = vunpack.c.l.s4 1966171168
    %v536 = vunpack.c.0.s8 %v535
    %v537 = vlaneseq
    %v538 = vshrl.u32 %v537, 7
    %v539 = vsub.s32 %v536, %v538
    %v540 = vrot.slane %v526, %v539
    %v541 = vcombine.high %v533, %v540
    %v543 = vunpack.c.l.s4 1966171168
    %v544 = vunpack.c.0.s8 %v543
    %v545 = vlaneseq
    %v546 = vshrl.u32 %v545, 7
    %v547 = vsub.s32 %v544, %v546
    %v548 = vrot.slane %v541, %v547
    %v550 = vadd.f32 %v514, %v548
    %s551 = sld [smem:[#allocation2 + $0xa]]
    %v552 = vstv %s551
    %v553 = vmul.f32 %v552, %v139
    %v554 = vmul.f32 %v552, %v140
    %v555 = vmul.f32 %v552, %v141
    %v556 = vmul.f32 %v552, %v142
    %v561 = vcombine.low %v553, %v554
    %v562 = vcombine.low %v555, %v556
    %v564 = vunpack.c.l.s4 1966171168
    %v565 = vunpack.c.0.s8 %v564
    %v566 = vlaneseq
    %v567 = vshrl.u32 %v566, 7
    %v568 = vsub.s32 %v565, %v567
    %v569 = vrot.slane %v561, %v568
    %v571 = vunpack.c.l.s4 1966171168
    %v572 = vunpack.c.0.s8 %v571
    %v573 = vlaneseq
    %v574 = vshrl.u32 %v573, 7
    %v575 = vsub.s32 %v572, %v574
    %v576 = vrot.slane %v562, %v575
    %v577 = vcombine.low %v569, %v576
    %v579 = vunpack.c.l.s4 1966171168
    %v580 = vunpack.c.0.s8 %v579
    %v581 = vlaneseq
    %v582 = vshrl.u32 %v581, 7
    %v583 = vsub.s32 %v580, %v582
    %v584 = vrot.slane %v577, %v583
    %v585 = vcombine.high %v584, %v584
    %v587 = vadd.f32 %v550, %v585
    %s588 = sld [smem:[#allocation2 + $0xb]]
    %v589 = vstv %s588
    %v590 = vmul.f32 %v589, %v139
    %v591 = vmul.f32 %v589, %v140
    %v592 = vmul.f32 %v589, %v141
    %v593 = vmul.f32 %v589, %v142
    %v598 = vcombine.low %v590, %v591
    %v599 = vcombine.low %v592, %v593
    %v601 = vunpack.c.l.s4 1966171168
    %v602 = vunpack.c.0.s8 %v601
    %v603 = vlaneseq
    %v604 = vshrl.u32 %v603, 7
    %v605 = vsub.s32 %v602, %v604
    %v606 = vrot.slane %v598, %v605
    %v608 = vunpack.c.l.s4 1966171168
    %v609 = vunpack.c.0.s8 %v608
    %v610 = vlaneseq
    %v611 = vshrl.u32 %v610, 7
    %v612 = vsub.s32 %v609, %v611
    %v613 = vrot.slane %v599, %v612
    %v614 = vcombine.high %v606, %v613
    %v616 = vunpack.c.l.s4 1966171168
    %v617 = vunpack.c.0.s8 %v616
    %v618 = vlaneseq
    %v619 = vshrl.u32 %v618, 7
    %v620 = vsub.s32 %v617, %v619
    %v621 = vrot.slane %v614, %v620
    %v622 = vcombine.high %v621, %v621
    %v624 = vadd.f32 %v587, %v622
    %v625 = vcombine.high %v312, %v312
    %v627 = vsub.f32 %v624, %v625
    %v628 = vmul.f32 %v627, %v627
    %v629 = vadd.f32 %v476, %v628
    %s630 = scalar_lea.vmem [#allocation9], 6
    %v631 = vld [vmem:[%s630] ss:$8 sm:$0xf]
    %s632 = sld [smem:[#allocation2 + $0xc]]
    %v633 = vstv %s632
    %v634 = vmul.f32 %v633, %v139
    %v635 = vmul.f32 %v633, %v140
    %v636 = vmul.f32 %v633, %v141
    %v637 = vmul.f32 %v633, %v142
    %v642 = vcombine.low %v634, %v635
    %v643 = vcombine.low %v636, %v637
    %v645 = vunpack.c.l.s4 1966171168
    %v646 = vunpack.c.0.s8 %v645
    %v647 = vlaneseq
    %v648 = vshrl.u32 %v647, 7
    %v649 = vsub.s32 %v646, %v648
    %v650 = vrot.slane %v642, %v649
    %v652 = vunpack.c.l.s4 1966171168
    %v653 = vunpack.c.0.s8 %v652
    %v654 = vlaneseq
    %v655 = vshrl.u32 %v654, 7
    %v656 = vsub.s32 %v653, %v655
    %v657 = vrot.slane %v643, %v656
    %v658 = vcombine.low %v650, %v657
    %v660 = vunpack.c.l.s4 1966171168
    %v661 = vunpack.c.0.s8 %v660
    %v662 = vlaneseq
    %v663 = vshrl.u32 %v662, 7
    %v664 = vsub.s32 %v661, %v663
    %v665 = vrot.slane %v658, %v664
    %v667 = vadd.f32 %v631, %v665
    %s668 = sld [smem:[#allocation2 + $0xd]]
    %v669 = vstv %s668
    %v670 = vmul.f32 %v669, %v139
    %v671 = vmul.f32 %v669, %v140
    %v672 = vmul.f32 %v669, %v141
    %v673 = vmul.f32 %v669, %v142
    %v678 = vcombine.low %v670, %v671
    %v679 = vcombine.low %v672, %v673
    %v681 = vunpack.c.l.s4 1966171168
    %v682 = vunpack.c.0.s8 %v681
    %v683 = vlaneseq
    %v684 = vshrl.u32 %v683, 7
    %v685 = vsub.s32 %v682, %v684
    %v686 = vrot.slane %v678, %v685
    %v688 = vunpack.c.l.s4 1966171168
    %v689 = vunpack.c.0.s8 %v688
    %v690 = vlaneseq
    %v691 = vshrl.u32 %v690, 7
    %v692 = vsub.s32 %v689, %v691
    %v693 = vrot.slane %v679, %v692
    %v694 = vcombine.high %v686, %v693
    %v696 = vunpack.c.l.s4 1966171168
    %v697 = vunpack.c.0.s8 %v696
    %v698 = vlaneseq
    %v699 = vshrl.u32 %v698, 7
    %v700 = vsub.s32 %v697, %v699
    %v701 = vrot.slane %v694, %v700
    %v703 = vadd.f32 %v667, %v701
    %s704 = sld [smem:[#allocation2 + $0xe]]
    %v705 = vstv %s704
    %v706 = vmul.f32 %v705, %v139
    %v707 = vmul.f32 %v705, %v140
    %v708 = vmul.f32 %v705, %v141
    %v709 = vmul.f32 %v705, %v142
    %v714 = vcombine.low %v706, %v707
    %v715 = vcombine.low %v708, %v709
    %v717 = vunpack.c.l.s4 1966171168
    %v718 = vunpack.c.0.s8 %v717
    %v719 = vlaneseq
    %v720 = vshrl.u32 %v719, 7
    %v721 = vsub.s32 %v718, %v720
    %v722 = vrot.slane %v714, %v721
    %v724 = vunpack.c.l.s4 1966171168
    %v725 = vunpack.c.0.s8 %v724
    %v726 = vlaneseq
    %v727 = vshrl.u32 %v726, 7
    %v728 = vsub.s32 %v725, %v727
    %v729 = vrot.slane %v715, %v728
    %v730 = vcombine.low %v722, %v729
    %v732 = vunpack.c.l.s4 1966171168
    %v733 = vunpack.c.0.s8 %v732
    %v734 = vlaneseq
    %v735 = vshrl.u32 %v734, 7
    %v736 = vsub.s32 %v733, %v735
    %v737 = vrot.slane %v730, %v736
    %v738 = vcombine.high %v737, %v737
    %v740 = vadd.f32 %v703, %v738
    %s741 = sld [smem:[#allocation2 + $0xf]]
    %v742 = vstv %s741
    %v743 = vmul.f32 %v742, %v139
    %v744 = vmul.f32 %v742, %v140
    %v745 = vmul.f32 %v742, %v141
    %v746 = vmul.f32 %v742, %v142
    %v751 = vcombine.low %v743, %v744
    %v752 = vcombine.low %v745, %v746
    %v754 = vunpack.c.l.s4 1966171168
    %v755 = vunpack.c.0.s8 %v754
    %v756 = vlaneseq
    %v757 = vshrl.u32 %v756, 7
    %v758 = vsub.s32 %v755, %v757
    %v759 = vrot.slane %v751, %v758
    %v761 = vunpack.c.l.s4 1966171168
    %v762 = vunpack.c.0.s8 %v761
    %v763 = vlaneseq
    %v764 = vshrl.u32 %v763, 7
    %v765 = vsub.s32 %v762, %v764
    %v766 = vrot.slane %v752, %v765
    %v767 = vcombine.high %v759, %v766
    %v769 = vunpack.c.l.s4 1966171168
    %v770 = vunpack.c.0.s8 %v769
    %v771 = vlaneseq
    %v772 = vshrl.u32 %v771, 7
    %v773 = vsub.s32 %v770, %v772
    %v774 = vrot.slane %v767, %v773
    %v775 = vcombine.high %v774, %v774
    %v777 = vadd.f32 %v740, %v775
    %v778 = vcombine.high %v472, %v472
    %v780 = vsub.f32 %v777, %v778
    %v781 = vmul.f32 %v780, %v780
    %v782 = vadd.f32 %v629, %v781
    %v783 = vmul.f32 %v782, %v68
    %v785 = vlaneseq
    %v786 = vshrl.u32 %v785, 7
    %v787 = vsub.s32 0, %v786
    %v788 = vrot.slane %v783, %v787
    %v789 = vlaneseq
    %v790 = vshrl.u32 %v789, 7
    %v791 = vsub.s32 1, %v790
    %v792 = vrot.slane %v783, %v791
    %v793 = vlaneseq
    %v794 = vshrl.u32 %v793, 7
    %v795 = vsub.s32 2, %v794
    %v796 = vrot.slane %v783, %v795
    %v797 = vlaneseq
    %v798 = vshrl.u32 %v797, 7
    %v799 = vsub.s32 3, %v798
    %v800 = vrot.slane %v783, %v799
    %vm805 = vcmask 1040384
    %v806 = vsel %vm805, %v788, 0.0
    %v807 = vsel %vm805, %v792, 0.0
    %v808 = vadd.f32 %v806, %v807
    %v809 = vsel %vm805, %v796, 0.0
    %v810 = vadd.f32 %v808, %v809
    %v811 = vsel %vm805, %v800, 0.0
    %v812 = vadd.f32 %v810, %v811
    %813 = vadd.xlane.f32.xlu0 %v812
    %v814 = vpop.xlane.xlu0 %813
    %vm815 = vcmask 0
    %816 = vst.msk [vmem:[#allocation10] sm:$0x1] %vm815, %v814
    // Predicated region
    $region34: #{tpu_custom_call.1} parent=1 // pred_check
      _
    $region35: #{tpu_custom_call.1} parent=1 // pred_check_branch
      %818 = sbr.rel (0) target = $region37
    $region36: #{tpu_custom_call.1} parent=1 // pred_region
      %s820 = ssub.s32 16, 16
      %821 = vsyncadd [#allocation4], %s820
      %s823 = sshll.u32 [#allocation10], 4
      %s824 = int_to_ptr.vmem [resolvable:$true] %s823
      %826 = dma.vmem_to_hbm [thread:$0]  %s824, 16, %s4, [#allocation4]
    $region37: #{tpu_custom_call.1} parent=1 // pred_fallthru
      _
    // Predicated region
    $region38: #{tpu_custom_call.1} parent=1 // pred_check
      _
    $region39: #{tpu_custom_call.1} parent=1 // pred_check_branch
      %828 = sbr.rel (0) target = $region41
    $region40: #{tpu_custom_call.1} parent=1 // pred_region
      %829 = dma.done [#allocation4], 16
    $region41: #{tpu_custom_call.1} parent=1 // pred_fallthru
      _
    %830 = vsyncpa [#allocation3], 1
    %831 = vsyncpa [#allocation8], 1
    %832 = vsyncpa [#allocation4], 1
    %833 = vsyncpa [#allocation5], 1

</llo_original>
